<compile_context>
chip_gen: v5e
topology: v5e:2x2
jax: 0.10.0
libtpu: 0.0.40
codegen_flags: <defaults>
</compile_context>

<pallas_src>
import functools

import jax
import jax.numpy as jnp
from jax.experimental import pallas as pl
from jax.experimental.pallas import tpu as pltpu


def _round_up(x: int, m: int) -> int:
    return (x + m - 1) // m * m


def _readout_kernel(x_ref, w_ref, b_ref, o_ref, acc_ref, *, inv_divisor):
    # x_ref: [tile_b, tile_r, F] bf16   w_ref: [F, O] f32   b_ref: [1, O] f32
    # o_ref: [tile_b, O] f32            acc_ref: [tile_b, F] f32 scratch
    k = pl.program_id(1)

    @pl.when(k == 0)
    def _():
        acc_ref[...] = jnp.zeros_like(acc_ref)

    # Hot loop: partial sum over this tile's reduction rows, accumulated in f32.
    acc_ref[...] += jnp.sum(x_ref[...].astype(jnp.float32), axis=1)

    @pl.when(k == pl.num_programs(1) - 1)
    def _():
        pooled = acc_ref[...] * inv_divisor                       # [tile_b, F]
        logits = jnp.dot(pooled, w_ref[...],
                         preferred_element_type=jnp.float32)      # MXU, [tile_b, O]
        o_ref[...] = logits + b_ref[...]                          # broadcast bias


def spiking_readout(spike_trains, weight, bias, readout_mode="rate",
                    *, tile_b_target=8, tile_r_target=512):
    """spike_trains: [B, T, N, F] f32; weight: [O, F] (PyTorch layout); bias: [O]."""
    B, T, N, F = spike_trains.shape
    O = weight.shape[0]

    if readout_mode == "rate":
        # mean over T then mean over N  ==  sum over fused T*N / (T*N)
        x = spike_trains.reshape(B, T * N, F)
        divisor = float(T * N)
    elif readout_mode == "count":
        # sum over T then mean over N   ==  sum over fused T*N / N
        x = spike_trains.reshape(B, T * N, F)
        divisor = float(N)
    elif readout_mode == "last":
        # last timestep then mean over N == sum over N / N
        x = spike_trains[:, -1, :, :]
        divisor = float(N)
    else:
        raise ValueError(f"Unknown readout mode: {readout_mode}")

    R = x.shape[1]

    # Binary spikes are exact in bf16 -> halve HBM traffic of the bandwidth-bound read.
    x = x.astype(jnp.bfloat16)

    # Tile sizes: reduction tile rows are a multiple of 16 (bf16 sublane packing) unless
    # the whole (padded) axis fits in a single tile.  Zero-padded rows/batches are
    # harmless: zeros don't change the sum and we divide by the true count.
    tile_r = min(tile_r_target, _round_up(R, 16))
    r_pad = _round_up(R, tile_r)
    tile_b = min(tile_b_target, _round_up(B, 8))
    b_pad = _round_up(B, tile_b)

    if (b_pad, r_pad) != (B, R):
        x = jnp.pad(x, ((0, b_pad - B), (0, r_pad - R), (0, 0)))

    w_t = jnp.transpose(weight).astype(jnp.float32)   # [F, O]
    b2 = bias.reshape(1, O).astype(jnp.float32)       # [1, O]

    grid = (b_pad // tile_b, r_pad // tile_r)

    flops = int(b_pad * r_pad * F + 2 * b_pad * F * O)
    bytes_accessed = int(x.size * x.dtype.itemsize
                         + w_t.size * 4 + b2.size * 4 + b_pad * O * 4)

    out = pl.pallas_call(
        functools.partial(_readout_kernel, inv_divisor=1.0 / divisor),
        out_shape=jax.ShapeDtypeStruct((b_pad, O), jnp.float32),
        grid_spec=pltpu.PrefetchScalarGridSpec(
            num_scalar_prefetch=0,
            grid=grid,
            in_specs=[
                # streamed spike tiles: [tile_b, tile_r, F]
                pl.BlockSpec((tile_b, tile_r, F), lambda i, k: (i, k, 0)),
                # weights / bias stay resident in VMEM across the whole grid
                pl.BlockSpec((F, O), lambda i, k: (0, 0)),
                pl.BlockSpec((1, O), lambda i, k: (0, 0)),
            ],
            out_specs=pl.BlockSpec((tile_b, O), lambda i, k: (i, 0)),
            scratch_shapes=[pltpu.VMEM((tile_b, F), jnp.float32)],
        ),
        compiler_params=pltpu.CompilerParams(
            dimension_semantics=("parallel", "arbitrary"),
            vmem_limit_bytes=48 * 1024 * 1024,
        ),
        cost_estimate=pl.CostEstimate(
            flops=flops, transcendentals=0, bytes_accessed=bytes_accessed),
    )(x, w_t, b2)

    return out[:B]


def _reference(spike_trains, weight, bias, readout_mode="rate"):
    if readout_mode == "rate":
        rates = spike_trains.mean(axis=1)
    elif readout_mode == "count":
        rates = spike_trains.sum(axis=1)
    elif readout_mode == "last":
        rates = spike_trains[:, -1, :, :]
    else:
        raise ValueError(readout_mode)
    pooled = rates.mean(axis=1)
    return pooled @ weight.T + bias


if __name__ == "__main__":
    # Small shapes consistent with the module: [B, T, N, F], F == input_dim.
    B, T, N, F, O = 2, 8, 4, 32, 10

    key = jax.random.PRNGKey(0)
    k_x, k_w, k_b = jax.random.split(key, 3)

    # Binary-ish spike trains in f32.
    spike_trains = (jax.random.uniform(k_x, (B, T, N, F)) < 0.3).astype(jnp.float32)

    # Deterministic Linear(F, O) init (PyTorch-style uniform bound 1/sqrt(F)).
    bound = 1.0 / jnp.sqrt(jnp.float32(F))
    weight = jax.random.uniform(k_w, (O, F), minval=-bound, maxval=bound).astype(jnp.float32)
    bias = jax.random.uniform(k_b, (O,), minval=-bound, maxval=bound).astype(jnp.float32)

    for mode in ("rate", "count", "last"):
        logits = spiking_readout(spike_trains, weight, bias, readout_mode=mode)
        logits = jax.block_until_ready(logits)
        ref = _reference(spike_trains, weight, bias, readout_mode=mode)
        assert logits.shape == (B, O), mode
        assert jnp.allclose(logits, ref, atol=1e-5, rtol=1e-5), mode

    print("KERNEL_OK")
</pallas_src>

<mosaic_0001>
module attributes {stable_mosaic.version = 11 : i64} {
  func.func @_readout_kernel(%arg0: i32, %arg1: i32, %arg2: memref<8x32x32xbf16, #tpu.memory_space<vmem>>, %arg3: memref<32x10xf32, #tpu.memory_space<vmem>>, %arg4: memref<1x10xf32, #tpu.memory_space<vmem>>, %arg5: memref<8x10xf32, #tpu.memory_space<vmem>>, %arg6: memref<8x32xf32, #tpu.memory_space<vmem>>) attributes {dimension_semantics = [#tpu.dimension_semantics<parallel>, #tpu.dimension_semantics<arbitrary>], iteration_bounds = array<i64: 1, 1>, scalar_prefetch = 0 : i64, scratch_operands = 1 : i64, tpu.core_type = #tpu.core_type<tc>, window_params = [{transform_indices = @transform_0, window_bounds = array<i64: 8, 32, 32>}, {pipeline_mode = #tpu.pipeline_mode<synchronous>, transform_indices = @transform_1, window_bounds = array<i64: 32, 10>}, {pipeline_mode = #tpu.pipeline_mode<synchronous>, transform_indices = @transform_2, window_bounds = array<i64: 1, 10>}, {transform_indices = @transform_3, window_bounds = array<i64: 8, 10>}]} {
    %c0_i32 = arith.constant 0 : i32
    %0 = arith.cmpi eq, %arg1, %c0_i32 : i32
    %1 = arith.extui %0 : i1 to i32
    %c0_i32_0 = arith.constant 0 : i32
    %2 = arith.cmpi ne, %1, %c0_i32_0 : i32
    scf.if %2 {
      %cst_9 = arith.constant 0.000000e+00 : f32
      %12 = vector.broadcast %cst_9 : f32 to vector<8x32xf32>
      %c0_10 = arith.constant 0 : index
      %c0_11 = arith.constant 0 : index
      %13 = vector.load %arg6[%c0_10, %c0_11] : memref<8x32xf32, #tpu.memory_space<vmem>>, vector<8x32xf32>
      tpu.vector_store %arg6[%c0_10, %c0_11], %12 {strides = array<i32>} : memref<8x32xf32, #tpu.memory_space<vmem>>, vector<8x32xf32>,
    } else {
    }
    %c0 = arith.constant 0 : index
    %c0_1 = arith.constant 0 : index
    %3 = vector.load %arg6[%c0, %c0_1] : memref<8x32xf32, #tpu.memory_space<vmem>>, vector<8x32xf32>
    %c0_2 = arith.constant 0 : index
    %c0_3 = arith.constant 0 : index
    %c0_4 = arith.constant 0 : index
    %4 = vector.load %arg2[%c0_2, %c0_3, %c0_4] : memref<8x32x32xbf16, #tpu.memory_space<vmem>>, vector<8x32x32xbf16>
    %5 = arith.extf %4 : vector<8x32x32xbf16> to vector<8x32x32xf32>
    %cst = arith.constant dense<0.000000e+00> : vector<8x32xf32>
    %6 = vector.multi_reduction <add>, %5, %cst [1] : vector<8x32x32xf32> to vector<8x32xf32>
    %7 = arith.addf %3, %6 : vector<8x32xf32>
    %c0_5 = arith.constant 0 : index
    %c0_6 = arith.constant 0 : index
    %8 = vector.load %arg6[%c0_5, %c0_6] : memref<8x32xf32, #tpu.memory_space<vmem>>, vector<8x32xf32>
    tpu.vector_store %arg6[%c0_5, %c0_6], %7 {strides = array<i32>} : memref<8x32xf32, #tpu.memory_space<vmem>>, vector<8x32xf32>,
    %c0_i32_7 = arith.constant 0 : i32
    %9 = arith.cmpi eq, %arg1, %c0_i32_7 : i32
    %10 = arith.extui %9 : i1 to i32
    %c0_i32_8 = arith.constant 0 : i32
    %11 = arith.cmpi ne, %10, %c0_i32_8 : i32
    scf.if %11 {
      %c0_9 = arith.constant 0 : index
      %c0_10 = arith.constant 0 : index
      %12 = vector.load %arg6[%c0_9, %c0_10] : memref<8x32xf32, #tpu.memory_space<vmem>>, vector<8x32xf32>
      %cst_11 = arith.constant 3.125000e-02 : f32
      %13 = vector.broadcast %cst_11 : f32 to vector<8x32xf32>
      %14 = arith.mulf %12, %13 : vector<8x32xf32>
      %c0_12 = arith.constant 0 : index
      %c0_13 = arith.constant 0 : index
      %15 = vector.load %arg3[%c0_12, %c0_13] : memref<32x10xf32, #tpu.memory_space<vmem>>, vector<32x10xf32>
      %cst_14 = arith.constant dense<0.000000e+00> : vector<8x10xf32>
      %16 = tpu.matmul %14, %15, %cst_14 {dimension_numbers = #tpu.dot_dimension_numbers<[1], [0], [0], [1], [0, 0, 1, 1], [], []>} : vector<8x32xf32>, vector<32x10xf32>, vector<8x10xf32> -> vector<8x10xf32>
      %c0_15 = arith.constant 0 : index
      %c0_16 = arith.constant 0 : index
      %17 = vector.load %arg4[%c0_15, %c0_16] : memref<1x10xf32, #tpu.memory_space<vmem>>, vector<1x10xf32>
      %18 = vector.broadcast %17 : vector<1x10xf32> to vector<8x10xf32>
      %19 = arith.addf %16, %18 : vector<8x10xf32>
      %c0_17 = arith.constant 0 : index
      %c0_18 = arith.constant 0 : index
      %20 = vector.load %arg5[%c0_17, %c0_18] : memref<8x10xf32, #tpu.memory_space<vmem>>, vector<8x10xf32>
      tpu.vector_store %arg5[%c0_17, %c0_18], %19 {strides = array<i32>} : memref<8x10xf32, #tpu.memory_space<vmem>>, vector<8x10xf32>,
    } else {
    }
    return
  }
  func.func @transform_0(%arg0: i32, %arg1: i32) -> (i32, i32, i32) {
    %c0_i32 = arith.constant 0 : i32
    %c0_i32_0 = arith.constant 0 : i32
    return %arg0, %arg1, %c0_i32 : i32, i32, i32
  }
  func.func @transform_1(%arg0: i32, %arg1: i32) -> (i32, i32) {
    %c0_i32 = arith.constant 0 : i32
    %c0_i32_0 = arith.constant 0 : i32
    %c0_i32_1 = arith.constant 0 : i32
    return %c0_i32, %c0_i32_0 : i32, i32
  }
  func.func @transform_2(%arg0: i32, %arg1: i32) -> (i32, i32) {
    %c0_i32 = arith.constant 0 : i32
    %c0_i32_0 = arith.constant 0 : i32
    %c0_i32_1 = arith.constant 0 : i32
    return %c0_i32, %c0_i32_0 : i32, i32
  }
  func.func @transform_3(%arg0: i32, %arg1: i32) -> (i32, i32) {
    %c0_i32 = arith.constant 0 : i32
    %c0_i32_0 = arith.constant 0 : i32
    return %arg0, %c0_i32 : i32, i32
  }
}

</mosaic_0001>

<llo_original>
// kernel: tpu_custom_call.1
$region0: #{tpu_custom_call.1}
  #allocation0 [shape = 'u32[]', space=smem, size = 0x4, offset = 0x4, fixed_abs, tag = 'smem constant byte address 0x4 - core index']
  #allocation1 [shape = 'u32[72,128]{1,0:T(1,128)}', space=vmem, size = 0x9000, scoped, tag = 'internal scratch']
  #allocation2 [shape = 'f32[8,32]{1,0:T(8,128)}', space=vmem, size = 0x1000, scoped, tag = 'scratch operand']
  %s0 = inlined_call_operand.hbm [shape: bf16[8,32,32], index: 0, kind: input, shape index: {}]
  %s1 = inlined_call_operand.vmem [shape: f32[32,10], index: 1, kind: input, shape index: {}]
  %s2 = inlined_call_operand.vmem [shape: f32[1,10], index: 2, kind: input, shape index: {}]
  %s3 = inlined_call_operand.hbm [shape: f32[8,10], index: 3, kind: output, shape index: {}]
  %s4 = sld [smem:[#allocation0]]
  $region34: #{tpu_custom_call.1} parent=0
    _
  %s6 = ssub.s32 1, %s4
  %s7 = scalar_select 0, %s6, %s4
  $region1: #{tpu_custom_call.1} parent=0
    #allocation3 [shape = 'u8[65536]{0}', space=vmem, size = 0x10000, scoped, tag = 'input window, operand 0, single buffered']
    #allocation4 [shape = 's32[1]{0}', space=sflag, size = 0x4, scoped, tag = 'scoped memory for tpu_custom_call.1']
    #allocation5 [shape = 's32[1]{0}', space=sflag, size = 0x4, scoped, tag = 'scoped memory for tpu_custom_call.1']
    #allocation6 [shape = 'u8[4096]{0}', space=vmem, size = 0x1000, scoped, tag = 'output window, operand 0, single buffered']
    %8 = vsyncpa [#allocation4], 0
    %9 = vsyncpa [#allocation5], 0
    // Predicated region
    $region2: #{tpu_custom_call.1} parent=1 // pred_check
      _
    $region3: #{tpu_custom_call.1} parent=1 // pred_check_branch
      %11 = sbr.rel (0) target = $region5
    $region4: #{tpu_custom_call.1} parent=1 // pred_region
      %13 = vsyncadd [#allocation4], 0
      %s14 = sshll.u32 %s0, 4
      %s15 = int_to_ptr.hbm [resolvable:$true] %s14
      %s16 = sshll.u32 [#allocation3], 4
      %s17 = int_to_ptr.vmem [resolvable:$true] %s16
      %22 = dma.hbm_to_vmem [thread:$0]  %s15, 2048, %s17, [#allocation4], 64, 64, 4
    $region5: #{tpu_custom_call.1} parent=1 // pred_fallthru
      _
    // Predicated region
    $region6: #{tpu_custom_call.1} parent=1 // pred_check
      _
    $region7: #{tpu_custom_call.1} parent=1 // pred_check_branch
      %24 = sbr.rel (0) target = $region9
    $region8: #{tpu_custom_call.1} parent=1 // pred_region
      _
    $region9: #{tpu_custom_call.1} parent=1 // pred_fallthru
      _
    // Predicated region
    $region10: #{tpu_custom_call.1} parent=1 // pred_check
      _
    $region11: #{tpu_custom_call.1} parent=1 // pred_check_branch
      %26 = sbr.rel (0) target = $region13
    $region12: #{tpu_custom_call.1} parent=1 // pred_region
      _
    $region13: #{tpu_custom_call.1} parent=1 // pred_fallthru
      _
    // Predicated region
    $region14: #{tpu_custom_call.1} parent=1 // pred_check
      _
    $region15: #{tpu_custom_call.1} parent=1 // pred_check_branch
      %28 = sbr.rel (0) target = $region17
    $region16: #{tpu_custom_call.1} parent=1 // pred_region
      %30 = dma.done [#allocation4], 2048
    $region17: #{tpu_custom_call.1} parent=1 // pred_fallthru
      _
    %p31 = scmp.eq.s32.totalorder 0, 0
    // Predicated region
    $region18: #{tpu_custom_call.1} parent=1 // pred_check
      %p32 = pneg %p31
    $region19: #{tpu_custom_call.1} parent=1 // pred_check_branch
      %34 = sbr.rel (%p32) target = $region21
    $region20: #{tpu_custom_call.1} parent=1 // pred_region
      %vm35 = vcmask 261120
      %36 = vst.msk [vmem:[#allocation2] sm:$0xff] %vm35, 0.0
    $region21: #{tpu_custom_call.1} parent=1 // pred_fallthru
      _
    %v37 = vld [vmem:[#allocation2] sm:$0xff]
    %v38 = vld [vmem:[#allocation3] sm:$0xf]
    %v39 = vld [vmem:[#allocation3 + $0x4] sm:$0xf]
    %v40 = vld [vmem:[#allocation3 + $0x8] sm:$0xf]
    %v41 = vld [vmem:[#allocation3 + $0xc] sm:$0xf]
    %v42 = vld [vmem:[#allocation3 + $0x10] sm:$0xf]
    %v43 = vld [vmem:[#allocation3 + $0x14] sm:$0xf]
    %v44 = vld [vmem:[#allocation3 + $0x18] sm:$0xf]
    %v45 = vld [vmem:[#allocation3 + $0x1c] sm:$0xf]
    %v46 = vld [vmem:[#allocation3 + $0x20] sm:$0xf]
    %v47 = vld [vmem:[#allocation3 + $0x24] sm:$0xf]
    %v48 = vld [vmem:[#allocation3 + $0x28] sm:$0xf]
    %v49 = vld [vmem:[#allocation3 + $0x2c] sm:$0xf]
    %v50 = vld [vmem:[#allocation3 + $0x30] sm:$0xf]
    %v51 = vld [vmem:[#allocation3 + $0x34] sm:$0xf]
    %v52 = vld [vmem:[#allocation3 + $0x38] sm:$0xf]
    %v53 = vld [vmem:[#allocation3 + $0x3c] sm:$0xf]
    %v54 = vld [vmem:[#allocation3 + $0x40] sm:$0xf]
    %v55 = vld [vmem:[#allocation3 + $0x44] sm:$0xf]
    %v56 = vld [vmem:[#allocation3 + $0x48] sm:$0xf]
    %v57 = vld [vmem:[#allocation3 + $0x4c] sm:$0xf]
    %v58 = vld [vmem:[#allocation3 + $0x50] sm:$0xf]
    %v59 = vld [vmem:[#allocation3 + $0x54] sm:$0xf]
    %v60 = vld [vmem:[#allocation3 + $0x58] sm:$0xf]
    %v61 = vld [vmem:[#allocation3 + $0x5c] sm:$0xf]
    %v62 = vld [vmem:[#allocation3 + $0x60] sm:$0xf]
    %v63 = vld [vmem:[#allocation3 + $0x64] sm:$0xf]
    %v64 = vld [vmem:[#allocation3 + $0x68] sm:$0xf]
    %v65 = vld [vmem:[#allocation3 + $0x6c] sm:$0xf]
    %v66 = vld [vmem:[#allocation3 + $0x70] sm:$0xf]
    %v67 = vld [vmem:[#allocation3 + $0x74] sm:$0xf]
    %v68 = vld [vmem:[#allocation3 + $0x78] sm:$0xf]
    %v69 = vld [vmem:[#allocation3 + $0x7c] sm:$0xf]
    %v70 = vunpack.c.l.bf16 %v38
    %v71 = vunpack.c.l.bf16 %v39
    %v72 = vunpack.c.l.bf16 %v40
    %v73 = vunpack.c.l.bf16 %v41
    %v74 = vunpack.c.l.bf16 %v42
    %v75 = vunpack.c.l.bf16 %v43
    %v76 = vunpack.c.l.bf16 %v44
    %v77 = vunpack.c.l.bf16 %v45
    %v78 = vunpack.c.l.bf16 %v46
    %v79 = vunpack.c.l.bf16 %v47
    %v80 = vunpack.c.l.bf16 %v48
    %v81 = vunpack.c.l.bf16 %v49
    %v82 = vunpack.c.l.bf16 %v50
    %v83 = vunpack.c.l.bf16 %v51
    %v84 = vunpack.c.l.bf16 %v52
    %v85 = vunpack.c.l.bf16 %v53
    %v86 = vunpack.c.l.bf16 %v54
    %v87 = vunpack.c.l.bf16 %v55
    %v88 = vunpack.c.l.bf16 %v56
    %v89 = vunpack.c.l.bf16 %v57
    %v90 = vunpack.c.l.bf16 %v58
    %v91 = vunpack.c.l.bf16 %v59
    %v92 = vunpack.c.l.bf16 %v60
    %v93 = vunpack.c.l.bf16 %v61
    %v94 = vunpack.c.l.bf16 %v62
    %v95 = vunpack.c.l.bf16 %v63
    %v96 = vunpack.c.l.bf16 %v64
    %v97 = vunpack.c.l.bf16 %v65
    %v98 = vunpack.c.l.bf16 %v66
    %v99 = vunpack.c.l.bf16 %v67
    %v100 = vunpack.c.l.bf16 %v68
    %v101 = vunpack.c.l.bf16 %v69
    %vm102 = vcmask 261120
    %v103 = vsel %vm102, %v70, 0.0
    %v104 = vsel %vm102, %v71, 0.0
    %v105 = vadd.f32 %v103, %v104
    %v106 = vsel %vm102, %v72, 0.0
    %v107 = vadd.f32 %v105, %v106
    %v108 = vsel %vm102, %v73, 0.0
    %v109 = vadd.f32 %v107, %v108
    %v110 = vrot.slane %v109, 4
    %v111 = vadd.f32 %v109, %v110
    %v112 = vrot.slane %v111, 2
    %v113 = vadd.f32 %v111, %v112
    %v114 = vrot.slane %v113, 1
    %v115 = vadd.f32 %v113, %v114
    %v116 = vsel %vm102, %v74, 0.0
    %v117 = vsel %vm102, %v75, 0.0
    %v118 = vadd.f32 %v116, %v117
    %v119 = vsel %vm102, %v76, 0.0
    %v120 = vadd.f32 %v118, %v119
    %v121 = vsel %vm102, %v77, 0.0
    %v122 = vadd.f32 %v120, %v121
    %v123 = vrot.slane %v122, 4
    %v124 = vadd.f32 %v122, %v123
    %v125 = vrot.slane %v124, 2
    %v126 = vadd.f32 %v124, %v125
    %v127 = vrot.slane %v126, 1
    %v128 = vadd.f32 %v126, %v127
    %v129 = vsel %vm102, %v78, 0.0
    %v130 = vsel %vm102, %v79, 0.0
    %v131 = vadd.f32 %v129, %v130
    %v132 = vsel %vm102, %v80, 0.0
    %v133 = vadd.f32 %v131, %v132
    %v134 = vsel %vm102, %v81, 0.0
    %v135 = vadd.f32 %v133, %v134
    %v136 = vrot.slane %v135, 4
    %v137 = vadd.f32 %v135, %v136
    %v138 = vrot.slane %v137, 2
    %v139 = vadd.f32 %v137, %v138
    %v140 = vrot.slane %v139, 1
    %v141 = vadd.f32 %v139, %v140
    %v142 = vsel %vm102, %v82, 0.0
    %v143 = vsel %vm102, %v83, 0.0
    %v144 = vadd.f32 %v142, %v143
    %v145 = vsel %vm102, %v84, 0.0
    %v146 = vadd.f32 %v144, %v145
    %v147 = vsel %vm102, %v85, 0.0
    %v148 = vadd.f32 %v146, %v147
    %v149 = vrot.slane %v148, 4
    %v150 = vadd.f32 %v148, %v149
    %v151 = vrot.slane %v150, 2
    %v152 = vadd.f32 %v150, %v151
    %v153 = vrot.slane %v152, 1
    %v154 = vadd.f32 %v152, %v153
    %v155 = vsel %vm102, %v86, 0.0
    %v156 = vsel %vm102, %v87, 0.0
    %v157 = vadd.f32 %v155, %v156
    %v158 = vsel %vm102, %v88, 0.0
    %v159 = vadd.f32 %v157, %v158
    %v160 = vsel %vm102, %v89, 0.0
    %v161 = vadd.f32 %v159, %v160
    %v162 = vrot.slane %v161, 4
    %v163 = vadd.f32 %v161, %v162
    %v164 = vrot.slane %v163, 2
    %v165 = vadd.f32 %v163, %v164
    %v166 = vrot.slane %v165, 1
    %v167 = vadd.f32 %v165, %v166
    %v168 = vsel %vm102, %v90, 0.0
    %v169 = vsel %vm102, %v91, 0.0
    %v170 = vadd.f32 %v168, %v169
    %v171 = vsel %vm102, %v92, 0.0
    %v172 = vadd.f32 %v170, %v171
    %v173 = vsel %vm102, %v93, 0.0
    %v174 = vadd.f32 %v172, %v173
    %v175 = vrot.slane %v174, 4
    %v176 = vadd.f32 %v174, %v175
    %v177 = vrot.slane %v176, 2
    %v178 = vadd.f32 %v176, %v177
    %v179 = vrot.slane %v178, 1
    %v180 = vadd.f32 %v178, %v179
    %v181 = vsel %vm102, %v94, 0.0
    %v182 = vsel %vm102, %v95, 0.0
    %v183 = vadd.f32 %v181, %v182
    %v184 = vsel %vm102, %v96, 0.0
    %v185 = vadd.f32 %v183, %v184
    %v186 = vsel %vm102, %v97, 0.0
    %v187 = vadd.f32 %v185, %v186
    %v188 = vrot.slane %v187, 4
    %v189 = vadd.f32 %v187, %v188
    %v190 = vrot.slane %v189, 2
    %v191 = vadd.f32 %v189, %v190
    %v192 = vrot.slane %v191, 1
    %v193 = vadd.f32 %v191, %v192
    %v194 = vsel %vm102, %v98, 0.0
    %v195 = vsel %vm102, %v99, 0.0
    %v196 = vadd.f32 %v194, %v195
    %v197 = vsel %vm102, %v100, 0.0
    %v198 = vadd.f32 %v196, %v197
    %v199 = vsel %vm102, %v101, 0.0
    %v200 = vadd.f32 %v198, %v199
    %v201 = vrot.slane %v200, 4
    %v202 = vadd.f32 %v200, %v201
    %v203 = vrot.slane %v202, 2
    %v204 = vadd.f32 %v202, %v203
    %v205 = vrot.slane %v204, 1
    %v206 = vadd.f32 %v204, %v205
    %vm215 = vcmask 1041409
    %v216 = vsel %vm215, %v128, %v115
    %vm217 = vcmask 1042434
    %v218 = vsel %vm217, %v141, %v216
    %vm219 = vcmask 1043459
    %v220 = vsel %vm219, %v154, %v218
    %vm221 = vcmask 1044484
    %v222 = vsel %vm221, %v167, %v220
    %vm223 = vcmask 1045509
    %v224 = vsel %vm223, %v180, %v222
    %vm225 = vcmask 1046534
    %v226 = vsel %vm225, %v193, %v224
    %vm227 = vcmask 1047559
    %v228 = vsel %vm227, %v206, %v226
    %v230 = vadd.f32 %v37, %v228
    %231 = vst.msk [vmem:[#allocation2] sm:$0xff] %vm102, %v230
    // Predicated region
    $region22: #{tpu_custom_call.1} parent=1 // pred_check
      %p232 = pneg %p31
    $region23: #{tpu_custom_call.1} parent=1 // pred_check_branch
      %234 = sbr.rel (%p232) target = $region25
    $region24: #{tpu_custom_call.1} parent=1 // pred_region
      %v235 = vld [vmem:[#allocation2] sm:$0xff]
      %v236 = vmul.f32 %v235, 0.03125
      %v237 = vld [vmem:[%s1] sm:$0xff]
      %v238 = vld [vmem:[%s1 + $0x8] sm:$0xff]
      %v239 = vld [vmem:[%s1 + $0x10] sm:$0xff]
      %v240 = vld [vmem:[%s1 + $0x18] sm:$0xff]
      %v241 = vld [vmem:[%s2] sm:$0x1]
      %v243 = vperm.slane %v241, 0
      %v246 = vsel %vm102, %v236, 0
      %248 = vmatpush.msra.mxu0 0.0
      %249 = vmatpush.msra.mxu0 0.0
      %250 = vmatpush.msra.mxu0 0.0
      %251 = vmatpush.msra.mxu0 0.0
      %252 = vmatpush.msra.mxu0 0.0
      %253 = vmatpush.msra.mxu0 0.0
      %254 = vmatpush.msra.mxu0 0.0
      %255 = vmatpush.msra.mxu0 0.0
      %256 = vmatpush.msra.mxu0 0.0
      %257 = vmatpush.msra.mxu0 0.0
      %258 = vmatpush.msra.mxu0 0.0
      %259 = vmatpush.msra.mxu0 0.0
      %260 = vmatpush.msra.mxu0 %v240
      %261 = vmatpush.msra.mxu0 %v239
      %262 = vmatpush.msra.mxu0 %v238
      %263 = vmatpush.msra.mxu0 %v237
      %264 = vmatmul.f32.gmra.mxu0 %v246
      %v265 = vpop.f32.mrf.mxu0
      %v266 = vadd.f32 %v243, %v265
      %267 = vdwg.mxu0
      %vm268 = vcmask 80896
      %269 = vst.msk [vmem:[#allocation6] sm:$0xff] %vm268, %v266
    $region25: #{tpu_custom_call.1} parent=1 // pred_fallthru
      _
    // Predicated region
    $region26: #{tpu_custom_call.1} parent=1 // pred_check
      _
    $region27: #{tpu_custom_call.1} parent=1 // pred_check_branch
      %271 = sbr.rel (0) target = $region29
    $region28: #{tpu_custom_call.1} parent=1 // pred_region
      %273 = vsyncadd [#allocation5], 0
      %s275 = sshll.u32 [#allocation6], 4
      %s276 = int_to_ptr.vmem [resolvable:$true] %s275
      %s277 = sshll.u32 %s3, 4
      %s278 = int_to_ptr.hbm [resolvable:$true] %s277
      %280 = dma.vmem_to_hbm [thread:$0]  %s276, 128, %s278, [#allocation5]
    $region29: #{tpu_custom_call.1} parent=1 // pred_fallthru
      _
    // Predicated region
    $region30: #{tpu_custom_call.1} parent=1 // pred_check
      _
    $region31: #{tpu_custom_call.1} parent=1 // pred_check_branch
      %282 = sbr.rel (0) target = $region33
    $region32: #{tpu_custom_call.1} parent=1 // pred_region
      %284 = dma.done [#allocation5], 128
    $region33: #{tpu_custom_call.1} parent=1 // pred_fallthru
      _
    %285 = vsyncpa [#allocation4], 1
    %286 = vsyncpa [#allocation5], 1

</llo_original>
